<compile_context>
chip_gen: v7x
topology: tpu7x:2x2x1
jax: 0.10.0
libtpu: 0.0.40
codegen_flags: <defaults>
</compile_context>

<pallas_src>
import jax
import jax.numpy as jnp
from jax.experimental import pallas as pl
from jax.experimental.pallas import tpu as pltpu


# ----------------------------------------------------------------------------- kernels
def _outconv_kernel_mxu(x_ref, w_ref, b_ref, o_ref):
    # x_ref: (1, C_in, T) VMEM   w_ref: (C_out, C_in) VMEM   b_ref: (C_out, 1) VMEM f32
    acc = jnp.dot(w_ref[...], x_ref[0], preferred_element_type=jnp.float32)
    o_ref[0] = (acc + b_ref[...]).astype(o_ref.dtype)


def _outconv_kernel_small(x_ref, w_ref, b_ref, o_ref):
    # Small-channel path (C_in, C_out <= 8): a ~3x4 contraction would waste the
    # whole MXU and add push/pop-FIFO latency to the per-step epilogue, so do a
    # dozen scalar*vector FMAs on otherwise-idle VALU slots instead.
    # x_ref: (1, C_in, T) VMEM   w_ref: (C_out, C_in) SMEM f32   b_ref: (C_out, 1) SMEM f32
    x = x_ref[0].astype(jnp.float32)                       # (C_in, T)
    c_out, c_in = w_ref.shape
    for o in range(c_out):
        acc = x[0:1] * w_ref[o, 0] + b_ref[o, 0]           # (1, T)
        for c in range(1, c_in):
            acc = acc + x[c:c + 1] * w_ref[o, c]
        o_ref[0, o:o + 1] = acc.astype(o_ref.dtype)        # full-width lane store


# ----------------------------------------------------------------------------- sizing
def _round_up(x, m):
    return -(-x // m) * m


def _vmem_budget_and_limit():
    """(tile budget, vmem_limit_bytes) picked per TPU generation."""
    cap = None
    try:
        info = pltpu.get_tpu_info()
        for attr in ("vmem_capacity_bytes", "vmem_size_bytes", "vmem_bytes"):
            cap = getattr(info, attr, None)
            if cap:
                break
    except Exception:
        cap = None
    if not cap:
        cap = 64 * 1024 * 1024            # unknown -> assume smallest (v7x per-TC)
    cap = int(cap)
    if cap >= 96 * 1024 * 1024:           # v5e / v6e: 128 MiB physical VMEM
        return 64 * 1024 * 1024, 96 * 1024 * 1024
    # v7x: 64 MiB per TensorCore -> double-buffered tiles + weights + headroom <= ~48 MiB
    return 40 * 1024 * 1024, 48 * 1024 * 1024


def _pick_tile_hw(hw, c_in, c_out, n_batch, dtype, vmem_budget_bytes):
    """Largest lane tile (multiple of 128, or full hw) that fits the VMEM budget,
    shrunk if needed so the grid keeps >=4 pipelined / parallel steps."""
    itemsize = jnp.dtype(dtype).itemsize
    sub = max(8, 32 // itemsize)          # sublane packing: 8 f32, 16 bf16, 32 int8
    # Bytes per lane column: double-buffered x + out tiles, rows padded to sublane tiles.
    per_col = 2 * (_round_up(c_in, sub) + _round_up(c_out, sub)) * itemsize
    max_tile = max(128, (vmem_budget_bytes // per_col) // 128 * 128)

    # Keep >=4 total grid steps whenever there is enough data: the pipeline then
    # overlaps the step-(i-1) writeback with the step-(i+1) fetch, and on v7x
    # both TensorCores get parallel work.  Tiny inputs stay one block per batch.
    if n_batch * hw >= 512:
        steps_per_batch = -(-4 // n_batch)
        if steps_per_batch > 1:
            target = _round_up(-(-hw // steps_per_batch), 128)
            max_tile = min(max_tile, max(128, target))

    if hw <= max_tile:
        return hw                         # full spatial extent: always a legal block dim
    return max_tile                       # multiple of 128; ragged tail masked by Pallas


# ----------------------------------------------------------------------------- forward
@jax.jit
def outconv_forward(x_nchw, weight, bias):
    """1x1 conv: x_nchw (N, C_in, H, W), weight (C_out, C_in, 1, 1), bias (C_out,)."""
    n, c_in, h, w = x_nchw.shape
    c_out = weight.shape[0]
    hw = h * w

    # NCHW kept; collapsing (H, W) -> H*W is a free reshape (no transpose, no pad).
    x_flat = x_nchw.reshape(n, c_in, hw)

    vmem_budget, vmem_limit = _vmem_budget_and_limit()
    tile_hw = _pick_tile_hw(hw, c_in, c_out, n, x_nchw.dtype, vmem_budget)
    grid = (n, pl.cdiv(hw, tile_hw))

    itemsize = jnp.dtype(x_nchw.dtype).itemsize
    cost = pl.CostEstimate(
        flops=2 * n * hw * c_in * c_out,
        transcendentals=0,
        bytes_accessed=n * (c_in + c_out) * hw * itemsize
        + c_out * c_in * itemsize
        + c_out * 4,
    )

    small_channels = (c_in <= 8) and (c_out <= 8)
    if small_channels:
        kernel = _outconv_kernel_small
        w_arg = weight.reshape(c_out, c_in).astype(jnp.float32)     # SMEM scalars
        b_arg = bias.reshape(c_out, 1).astype(jnp.float32)
        w_spec = pl.BlockSpec(memory_space=pltpu.MemorySpace.SMEM)
        b_spec = pl.BlockSpec(memory_space=pltpu.MemorySpace.SMEM)
    else:
        kernel = _outconv_kernel_mxu
        w_arg = weight.reshape(c_out, c_in).astype(x_nchw.dtype)    # VMEM-resident weight
        b_arg = bias.reshape(c_out, 1).astype(jnp.float32)
        w_spec = pl.BlockSpec((c_out, c_in), lambda b, i: (0, 0))
        b_spec = pl.BlockSpec((c_out, 1), lambda b, i: (0, 0))

    out_flat = pl.pallas_call(
        kernel,
        out_shape=jax.ShapeDtypeStruct((n, c_out, hw), x_nchw.dtype),
        grid_spec=pltpu.PrefetchScalarGridSpec(
            num_scalar_prefetch=0,
            grid=grid,
            in_specs=[
                pl.BlockSpec((1, c_in, tile_hw), lambda b, i: (b, 0, i)),   # x tile
                w_spec,                                                      # weight
                b_spec,                                                      # bias
            ],
            out_specs=pl.BlockSpec((1, c_out, tile_hw), lambda b, i: (b, 0, i)),
        ),
        compiler_params=pltpu.CompilerParams(
            dimension_semantics=("parallel", "parallel"),
            vmem_limit_bytes=vmem_limit,
        ),
        cost_estimate=cost,
    )(x_flat, w_arg, b_arg)

    # (N, C_out, H*W) -> (N, C_out, H, W): free reshape, output already NCHW.
    return out_flat.reshape(n, c_out, h, w)


# ----------------------------------------------------------------------------- init / test
def init_outconv_params(key, in_ch, out_ch, dtype=jnp.float32):
    """Deterministic init mimicking nn.Conv2d default (uniform in +-1/sqrt(fan_in))."""
    kw, kb = jax.random.split(key)
    bound = 1.0 / (in_ch ** 0.5)
    weight = jax.random.uniform(kw, (out_ch, in_ch, 1, 1), dtype,
                                minval=-bound, maxval=bound)
    bias = jax.random.uniform(kb, (out_ch,), dtype, minval=-bound, maxval=bound)
    return weight, bias


def _ref_1x1_conv(x, weight, bias):
    c_out, c_in = weight.shape[0], weight.shape[1]
    return (jnp.einsum("nchw,oc->nohw", x, weight.reshape(c_out, c_in))
            + bias.reshape(1, c_out, 1, 1))


if __name__ == "__main__":
    key = jax.random.PRNGKey(0)
    k_x, k_p, k_x2, k_p2 = jax.random.split(key, 4)

    # Small-channel (VPU) path: matches the UNet outconv config (few output classes).
    batch, in_ch, out_ch, spatial = 2, 4, 3, 16
    x = jax.random.normal(k_x, (batch, in_ch, spatial, spatial), jnp.float32)
    weight, bias = init_outconv_params(k_p, in_ch, out_ch)
    y = jax.block_until_ready(outconv_forward(x, weight, bias))
    assert y.shape == (batch, out_ch, spatial, spatial)
    assert jnp.allclose(y, _ref_1x1_conv(x, weight, bias), atol=1e-5, rtol=1e-5)

    # Wider-channel (MXU) path.
    in_ch2, out_ch2 = 32, 16
    x2 = jax.random.normal(k_x2, (batch, in_ch2, spatial, spatial), jnp.float32)
    weight2, bias2 = init_outconv_params(k_p2, in_ch2, out_ch2)
    y2 = jax.block_until_ready(outconv_forward(x2, weight2, bias2))
    assert y2.shape == (batch, out_ch2, spatial, spatial)
    assert jnp.allclose(y2, _ref_1x1_conv(x2, weight2, bias2), atol=1e-5, rtol=1e-5)

    print("KERNEL_OK")
</pallas_src>

<mosaic_0001>
module attributes {stable_mosaic.version = 11 : i64} {
  func.func @_outconv_kernel_small(%arg0: i32, %arg1: i32, %arg2: memref<1x4x128xf32, #tpu.memory_space<vmem>>, %arg3: memref<3x4xf32, #tpu.memory_space<smem>>, %arg4: memref<3x1xf32, #tpu.memory_space<smem>>, %arg5: memref<1x3x128xf32, #tpu.memory_space<vmem>>) attributes {dimension_semantics = [#tpu.dimension_semantics<parallel>, #tpu.dimension_semantics<parallel>], iteration_bounds = array<i64: 2, 2>, scalar_prefetch = 0 : i64, scratch_operands = 0 : i64, tpu.core_type = #tpu.core_type<tc>, window_params = [{transform_indices = @transform_0, window_bounds = array<i64: 1, 4, 128>}, {transform_indices = @transform_1, window_bounds = array<i64: 3, 4>}, {transform_indices = @transform_2, window_bounds = array<i64: 3, 1>}, {transform_indices = @transform_3, window_bounds = array<i64: 1, 3, 128>}]} {
    %c0 = arith.constant 0 : index
    %c0_0 = arith.constant 0 : index
    %c0_1 = arith.constant 0 : index
    %0 = vector.load %arg2[%c0, %c0_0, %c0_1] : memref<1x4x128xf32, #tpu.memory_space<vmem>>, vector<1x4x128xf32>
    %1 = vector.shape_cast %0 : vector<1x4x128xf32> to vector<4x128xf32>
    %2 = vector.extract_strided_slice %1 {offsets = [0, 0], sizes = [1, 128], strides = [1, 1]} : vector<4x128xf32> to vector<1x128xf32>
    %c0_2 = arith.constant 0 : index
    %c0_3 = arith.constant 0 : index
    %3 = memref.load %arg3[%c0_2, %c0_3] : memref<3x4xf32, #tpu.memory_space<smem>>
    %4 = vector.broadcast %3 : f32 to vector<1x128xf32>
    %5 = arith.mulf %2, %4 : vector<1x128xf32>
    %c0_4 = arith.constant 0 : index
    %c0_5 = arith.constant 0 : index
    %6 = memref.load %arg4[%c0_4, %c0_5] : memref<3x1xf32, #tpu.memory_space<smem>>
    %7 = vector.broadcast %6 : f32 to vector<1x128xf32>
    %8 = arith.addf %5, %7 : vector<1x128xf32>
    %9 = vector.extract_strided_slice %1 {offsets = [1, 0], sizes = [1, 128], strides = [1, 1]} : vector<4x128xf32> to vector<1x128xf32>
    %c0_6 = arith.constant 0 : index
    %c1 = arith.constant 1 : index
    %10 = memref.load %arg3[%c0_6, %c1] : memref<3x4xf32, #tpu.memory_space<smem>>
    %11 = vector.broadcast %10 : f32 to vector<1x128xf32>
    %12 = arith.mulf %9, %11 : vector<1x128xf32>
    %13 = arith.addf %8, %12 : vector<1x128xf32>
    %14 = vector.extract_strided_slice %1 {offsets = [2, 0], sizes = [1, 128], strides = [1, 1]} : vector<4x128xf32> to vector<1x128xf32>
    %c0_7 = arith.constant 0 : index
    %c2 = arith.constant 2 : index
    %15 = memref.load %arg3[%c0_7, %c2] : memref<3x4xf32, #tpu.memory_space<smem>>
    %16 = vector.broadcast %15 : f32 to vector<1x128xf32>
    %17 = arith.mulf %14, %16 : vector<1x128xf32>
    %18 = arith.addf %13, %17 : vector<1x128xf32>
    %19 = vector.extract_strided_slice %1 {offsets = [3, 0], sizes = [1, 128], strides = [1, 1]} : vector<4x128xf32> to vector<1x128xf32>
    %c0_8 = arith.constant 0 : index
    %c3 = arith.constant 3 : index
    %20 = memref.load %arg3[%c0_8, %c3] : memref<3x4xf32, #tpu.memory_space<smem>>
    %21 = vector.broadcast %20 : f32 to vector<1x128xf32>
    %22 = arith.mulf %19, %21 : vector<1x128xf32>
    %23 = arith.addf %18, %22 : vector<1x128xf32>
    %c0_9 = arith.constant 0 : index
    %c0_10 = arith.constant 0 : index
    %c0_11 = arith.constant 0 : index
    %24 = vector.load %arg5[%c0_9, %c0_10, %c0_11] : memref<1x3x128xf32, #tpu.memory_space<vmem>>, vector<1x1x128xf32>
    %25 = vector.shape_cast %24 : vector<1x1x128xf32> to vector<1x128xf32>
    %26 = vector.shape_cast %23 : vector<1x128xf32> to vector<1x1x128xf32>
    tpu.vector_store %arg5[%c0_9, %c0_10, %c0_11], %26 {strides = array<i32>} : memref<1x3x128xf32, #tpu.memory_space<vmem>>, vector<1x1x128xf32>,
    %27 = vector.extract_strided_slice %1 {offsets = [0, 0], sizes = [1, 128], strides = [1, 1]} : vector<4x128xf32> to vector<1x128xf32>
    %c1_12 = arith.constant 1 : index
    %c0_13 = arith.constant 0 : index
    %28 = memref.load %arg3[%c1_12, %c0_13] : memref<3x4xf32, #tpu.memory_space<smem>>
    %29 = vector.broadcast %28 : f32 to vector<1x128xf32>
    %30 = arith.mulf %27, %29 : vector<1x128xf32>
    %c1_14 = arith.constant 1 : index
    %c0_15 = arith.constant 0 : index
    %31 = memref.load %arg4[%c1_14, %c0_15] : memref<3x1xf32, #tpu.memory_space<smem>>
    %32 = vector.broadcast %31 : f32 to vector<1x128xf32>
    %33 = arith.addf %30, %32 : vector<1x128xf32>
    %34 = vector.extract_strided_slice %1 {offsets = [1, 0], sizes = [1, 128], strides = [1, 1]} : vector<4x128xf32> to vector<1x128xf32>
    %c1_16 = arith.constant 1 : index
    %c1_17 = arith.constant 1 : index
    %35 = memref.load %arg3[%c1_16, %c1_17] : memref<3x4xf32, #tpu.memory_space<smem>>
    %36 = vector.broadcast %35 : f32 to vector<1x128xf32>
    %37 = arith.mulf %34, %36 : vector<1x128xf32>
    %38 = arith.addf %33, %37 : vector<1x128xf32>
    %39 = vector.extract_strided_slice %1 {offsets = [2, 0], sizes = [1, 128], strides = [1, 1]} : vector<4x128xf32> to vector<1x128xf32>
    %c1_18 = arith.constant 1 : index
    %c2_19 = arith.constant 2 : index
    %40 = memref.load %arg3[%c1_18, %c2_19] : memref<3x4xf32, #tpu.memory_space<smem>>
    %41 = vector.broadcast %40 : f32 to vector<1x128xf32>
    %42 = arith.mulf %39, %41 : vector<1x128xf32>
    %43 = arith.addf %38, %42 : vector<1x128xf32>
    %44 = vector.extract_strided_slice %1 {offsets = [3, 0], sizes = [1, 128], strides = [1, 1]} : vector<4x128xf32> to vector<1x128xf32>
    %c1_20 = arith.constant 1 : index
    %c3_21 = arith.constant 3 : index
    %45 = memref.load %arg3[%c1_20, %c3_21] : memref<3x4xf32, #tpu.memory_space<smem>>
    %46 = vector.broadcast %45 : f32 to vector<1x128xf32>
    %47 = arith.mulf %44, %46 : vector<1x128xf32>
    %48 = arith.addf %43, %47 : vector<1x128xf32>
    %c0_22 = arith.constant 0 : index
    %c1_23 = arith.constant 1 : index
    %c0_24 = arith.constant 0 : index
    %49 = vector.load %arg5[%c0_22, %c1_23, %c0_24] : memref<1x3x128xf32, #tpu.memory_space<vmem>>, vector<1x1x128xf32>
    %50 = vector.shape_cast %49 : vector<1x1x128xf32> to vector<1x128xf32>
    %51 = vector.shape_cast %48 : vector<1x128xf32> to vector<1x1x128xf32>
    tpu.vector_store %arg5[%c0_22, %c1_23, %c0_24], %51 {strides = array<i32>} : memref<1x3x128xf32, #tpu.memory_space<vmem>>, vector<1x1x128xf32>,
    %52 = vector.extract_strided_slice %1 {offsets = [0, 0], sizes = [1, 128], strides = [1, 1]} : vector<4x128xf32> to vector<1x128xf32>
    %c2_25 = arith.constant 2 : index
    %c0_26 = arith.constant 0 : index
    %53 = memref.load %arg3[%c2_25, %c0_26] : memref<3x4xf32, #tpu.memory_space<smem>>
    %54 = vector.broadcast %53 : f32 to vector<1x128xf32>
    %55 = arith.mulf %52, %54 : vector<1x128xf32>
    %c2_27 = arith.constant 2 : index
    %c0_28 = arith.constant 0 : index
    %56 = memref.load %arg4[%c2_27, %c0_28] : memref<3x1xf32, #tpu.memory_space<smem>>
    %57 = vector.broadcast %56 : f32 to vector<1x128xf32>
    %58 = arith.addf %55, %57 : vector<1x128xf32>
    %59 = vector.extract_strided_slice %1 {offsets = [1, 0], sizes = [1, 128], strides = [1, 1]} : vector<4x128xf32> to vector<1x128xf32>
    %c2_29 = arith.constant 2 : index
    %c1_30 = arith.constant 1 : index
    %60 = memref.load %arg3[%c2_29, %c1_30] : memref<3x4xf32, #tpu.memory_space<smem>>
    %61 = vector.broadcast %60 : f32 to vector<1x128xf32>
    %62 = arith.mulf %59, %61 : vector<1x128xf32>
    %63 = arith.addf %58, %62 : vector<1x128xf32>
    %64 = vector.extract_strided_slice %1 {offsets = [2, 0], sizes = [1, 128], strides = [1, 1]} : vector<4x128xf32> to vector<1x128xf32>
    %c2_31 = arith.constant 2 : index
    %c2_32 = arith.constant 2 : index
    %65 = memref.load %arg3[%c2_31, %c2_32] : memref<3x4xf32, #tpu.memory_space<smem>>
    %66 = vector.broadcast %65 : f32 to vector<1x128xf32>
    %67 = arith.mulf %64, %66 : vector<1x128xf32>
    %68 = arith.addf %63, %67 : vector<1x128xf32>
    %69 = vector.extract_strided_slice %1 {offsets = [3, 0], sizes = [1, 128], strides = [1, 1]} : vector<4x128xf32> to vector<1x128xf32>
    %c2_33 = arith.constant 2 : index
    %c3_34 = arith.constant 3 : index
    %70 = memref.load %arg3[%c2_33, %c3_34] : memref<3x4xf32, #tpu.memory_space<smem>>
    %71 = vector.broadcast %70 : f32 to vector<1x128xf32>
    %72 = arith.mulf %69, %71 : vector<1x128xf32>
    %73 = arith.addf %68, %72 : vector<1x128xf32>
    %c0_35 = arith.constant 0 : index
    %c2_36 = arith.constant 2 : index
    %c0_37 = arith.constant 0 : index
    %74 = vector.load %arg5[%c0_35, %c2_36, %c0_37] : memref<1x3x128xf32, #tpu.memory_space<vmem>>, vector<1x1x128xf32>
    %75 = vector.shape_cast %74 : vector<1x1x128xf32> to vector<1x128xf32>
    %76 = vector.shape_cast %73 : vector<1x128xf32> to vector<1x1x128xf32>
    tpu.vector_store %arg5[%c0_35, %c2_36, %c0_37], %76 {strides = array<i32>} : memref<1x3x128xf32, #tpu.memory_space<vmem>>, vector<1x1x128xf32>,
    return
  }
  func.func @transform_0(%arg0: i32, %arg1: i32) -> (i32, i32, i32) {
    %c0_i32 = arith.constant 0 : i32
    %c0_i32_0 = arith.constant 0 : i32
    return %arg0, %c0_i32, %arg1 : i32, i32, i32
  }
  func.func @transform_1(%arg0: i32, %arg1: i32) -> (i32, i32) {
    %c0_i32 = arith.constant 0 : i32
    %c0_i32_0 = arith.constant 0 : i32
    %c0_i32_1 = arith.constant 0 : i32
    return %c0_i32, %c0_i32_0 : i32, i32
  }
  func.func @transform_2(%arg0: i32, %arg1: i32) -> (i32, i32) {
    %c0_i32 = arith.constant 0 : i32
    %c0_i32_0 = arith.constant 0 : i32
    %c0_i32_1 = arith.constant 0 : i32
    return %c0_i32, %c0_i32_0 : i32, i32
  }
  func.func @transform_3(%arg0: i32, %arg1: i32) -> (i32, i32, i32) {
    %c0_i32 = arith.constant 0 : i32
    %c0_i32_0 = arith.constant 0 : i32
    return %arg0, %c0_i32, %arg1 : i32, i32, i32
  }
}

</mosaic_0001>

<llo_original>
// kernel: outconv_forward.1
$region0: #{outconv_forward.1}
  #allocation0 [shape = 'u32[]', space=smem, size = 0x4, offset = 0x4, fixed_abs, tag = 'smem constant byte address 0x4 - core index']
  #allocation1 [shape = 'u32[144,128]{1,0:T(1,128)}', space=vmem, size = 0x12000, scoped, tag = 'internal scratch']
  %s0 = inlined_call_operand.vmem [shape: f32[2,4,256], index: 0, kind: input, shape index: {}]
  %s1 = inlined_call_operand.vmem [shape: f32[3,4], index: 1, kind: input, shape index: {}]
  %s2 = inlined_call_operand.vmem [shape: f32[3,1], index: 2, kind: input, shape index: {}]
  %s3 = inlined_call_operand.vmem [shape: f32[2,3,256], index: 3, kind: output, shape index: {}]
  %s4 = sld [smem:[#allocation0]]
  $region53: #{outconv_forward.1} parent=0
    _
  %s6 = ssub.s32 1, %s4
  %s7 = scalar_select 0, %s6, %s4
  $region1: #{outconv_forward.1} parent=0
    #allocation2 [shape = 'u8[2048]{0}', space=smem, size = 0x800, scoped, tag = 'input window, operand 1, single buffered']
    #allocation3 [shape = 's32[2]{0}', space=sflag, size = 0x8, scoped, tag = 'scoped memory for outconv_forward.1']
    #allocation4 [shape = 'u8[2048]{0}', space=smem, size = 0x800, scoped, tag = 'input window, operand 2, single buffered']
    #allocation5 [shape = 's32[1]{0}', space=sflag, size = 0x4, scoped, tag = 'scoped memory for outconv_forward.1']
    %8 = vsyncpa [#allocation3], 0
    %9 = vsyncpa [#allocation5], 0
    loop: start=0, step=1, limit=6
    $region2: #{outconv_forward.1} parent=1 // loop_pre_header
      _
    $region3: #{outconv_forward.1} parent=1 // loop_header
      %s11 = sphi 0, %s15
      %p12 = scmp.ge.s32.totalorder %s11, 6
      %s18 = sphi 0, %s30
      %s19 = sphi 0, %s26
      %s20 = sphi 0, %s18
      %s21 = sphi 0, %s19
      %s22 = sphi 0, %s20
      %s23 = sphi 0, %s21
      %s35 = sphi 0, %s37
      %s38 = sphi 0, %s35
      %s39 = sphi 0, %s38
      %s55 = sphi 0, %s39
      %s59 = sphi 0, %s59
      %s61 = sphi 0, %s59
      %s62 = sphi 0, %s61
      %s76 = sphi 0, %s62
      %s80 = sphi 0, %s80
      %s82 = sphi 0, %s80
      %s83 = sphi 0, %s82
      %s97 = sphi 0, %s83
      %s105 = sphi 0, %s107
      %s108 = sphi 0, %s105
      %s109 = sphi 0, %s108
      %s125 = sphi 0, %s109
    $region4: #{outconv_forward.1} parent=1 // loop_header_branch
      %14 = sbr.rel (%p12) target = $region8
    $region5: #{outconv_forward.1} parent=1 // loop_body
      %s16 = ssub.s32 %s11, 1
      %s17 = ssub.s32 %s11, 2
      %s24 = sadd.s32 1, %s19
      %p25 = scmp.ge.s32.totalorder %s24, 2
      %s26 = scalar_select %p25, 0, %s24
      %s27 = sadd.s32 1, %s18
      %s28 = scalar_select %p25, %s27, %s18
      %p29 = scmp.ge.s32.totalorder %s28, 2
      %s30 = scalar_select %p29, 0, %s28
      %s31 = ssub.s32 %s18, %s30
      %s32 = ssub.s32 %s19, %s26
      %s33 = sor.u32 %s31, %s32
      %p34 = scmp.eq.s32.totalorder %s33, 0
      %s36 = sadd.s32 %s35, 1
      %s37 = scalar_select %p34, %s35, %s36
      %p40 = pneg %p34
      %p41 = scmp.eq.s32.totalorder %s11, 3
      %p42 = por %p40, %p41
      %p43 = scmp.ne.s32.totalorder %s35, %s38
      %p44 = scmp.eq.s32.totalorder %s11, 0
      %p45 = por %p43, %p44
      %p46 = scmp.ne.s32.totalorder %s35, %s38
      %p47 = scmp.eq.s32.totalorder %s16, 3
      %p48 = por %p46, %p47
      %p49 = scmp.ne.s32.totalorder %s38, %s39
      %p50 = scmp.eq.s32.totalorder %s16, 0
      %p51 = por %p49, %p50
      %p52 = scmp.ne.s32.totalorder %s38, %s39
      %p53 = scmp.eq.s32.totalorder %s17, 3
      %p54 = por %p52, %p53
      %p56 = scmp.ne.s32.totalorder %s39, %s55
      %p57 = scmp.eq.s32.totalorder %s17, 0
      %p58 = por %p56, %p57
      %s60 = sadd.s32 %s59, 1
      %p63 = scmp.eq.s32.totalorder %s11, 3
      %p64 = scmp.ne.s32.totalorder %s59, %s61
      %p65 = scmp.eq.s32.totalorder %s11, 0
      %p66 = por %p64, %p65
      %p67 = scmp.ne.s32.totalorder %s59, %s61
      %p68 = scmp.eq.s32.totalorder %s16, 3
      %p69 = por %p67, %p68
      %p70 = scmp.ne.s32.totalorder %s61, %s62
      %p71 = scmp.eq.s32.totalorder %s16, 0
      %p72 = por %p70, %p71
      %p73 = scmp.ne.s32.totalorder %s61, %s62
      %p74 = scmp.eq.s32.totalorder %s17, 3
      %p75 = por %p73, %p74
      %p77 = scmp.ne.s32.totalorder %s62, %s76
      %p78 = scmp.eq.s32.totalorder %s17, 0
      %p79 = por %p77, %p78
      %s81 = sadd.s32 %s80, 1
      %p84 = scmp.eq.s32.totalorder %s11, 3
      %p85 = scmp.ne.s32.totalorder %s80, %s82
      %p86 = scmp.eq.s32.totalorder %s11, 0
      %p87 = por %p85, %p86
      %p88 = scmp.ne.s32.totalorder %s80, %s82
      %p89 = scmp.eq.s32.totalorder %s16, 3
      %p90 = por %p88, %p89
      %p91 = scmp.ne.s32.totalorder %s82, %s83
      %p92 = scmp.eq.s32.totalorder %s16, 0
      %p93 = por %p91, %p92
      %p94 = scmp.ne.s32.totalorder %s82, %s83
      %p95 = scmp.eq.s32.totalorder %s17, 3
      %p96 = por %p94, %p95
      %p98 = scmp.ne.s32.totalorder %s83, %s97
      %p99 = scmp.eq.s32.totalorder %s17, 0
      %p100 = por %p98, %p99
      %s101 = ssub.s32 %s18, %s30
      %s102 = ssub.s32 %s19, %s26
      %s103 = sor.u32 %s101, %s102
      %p104 = scmp.eq.s32.totalorder %s103, 0
      %s106 = sadd.s32 %s105, 1
      %s107 = scalar_select %p104, %s105, %s106
      %p110 = pneg %p104
      %p111 = scmp.eq.s32.totalorder %s11, 3
      %p112 = por %p110, %p111
      %p113 = scmp.ne.s32.totalorder %s105, %s108
      %p114 = scmp.eq.s32.totalorder %s11, 0
      %p115 = por %p113, %p114
      %p116 = scmp.ne.s32.totalorder %s105, %s108
      %p117 = scmp.eq.s32.totalorder %s16, 3
      %p118 = por %p116, %p117
      %p119 = scmp.ne.s32.totalorder %s108, %s109
      %p120 = scmp.eq.s32.totalorder %s16, 0
      %p121 = por %p119, %p120
      %p122 = scmp.ne.s32.totalorder %s108, %s109
      %p123 = scmp.eq.s32.totalorder %s17, 3
      %p124 = por %p122, %p123
      %p126 = scmp.ne.s32.totalorder %s109, %s125
      %p127 = scmp.eq.s32.totalorder %s17, 0
      %p128 = por %p126, %p127
      %p129 = scmp.le.s32.totalorder 1, %s11
      %p130 = scmp.lt.s32.totalorder %s11, 5
      %p131 = pnand %p129, %p130
      %p132 = pneg %p131
      // Predicated region
      $region9: #{outconv_forward.1} parent=5 // pred_check
        _
      $region10: #{outconv_forward.1} parent=5 // pred_check_branch
        %134 = sbr.rel (%p131) target = $region12
      $region11: #{outconv_forward.1} parent=5 // pred_region
        %s135 = ssub.s32 %s11, 1
        // Predicated region
        $region13: #{outconv_forward.1} parent=11 // pred_check
          %p136 = pneg %p72
        $region14: #{outconv_forward.1} parent=11 // pred_check_branch
          %138 = sbr.rel (%p136) target = $region16
        $region15: #{outconv_forward.1} parent=11 // pred_region
          %s140 = ssub.s32 64, 64
          %141 = vsyncadd [#allocation3], %s140
          %s143 = sshll.u32 %s1, 4
          %s144 = int_to_ptr.vmem [resolvable:$true] %s143
          %146 = dma.vmem_to_smem %s144, 64, [#allocation2], [#allocation3]
        $region16: #{outconv_forward.1} parent=11 // pred_fallthru
          _
        // Predicated region
        $region17: #{outconv_forward.1} parent=11 // pred_check
          %p147 = pneg %p93
        $region18: #{outconv_forward.1} parent=11 // pred_check_branch
          %149 = sbr.rel (%p147) target = $region20
        $region19: #{outconv_forward.1} parent=11 // pred_region
          %s151 = ssub.s32 64, 64
          %152 = vsyncadd [#allocation5], %s151
          %s154 = sshll.u32 %s2, 4
          %s155 = int_to_ptr.vmem [resolvable:$true] %s154
          %157 = dma.vmem_to_smem %s155, 64, [#allocation4], [#allocation5]
        $region20: #{outconv_forward.1} parent=11 // pred_fallthru
          _
      $region12: #{outconv_forward.1} parent=5 // pred_fallthru
        _
      %p158 = scmp.lt.s32.totalorder %s11, 4
      // Predicated region
      $region21: #{outconv_forward.1} parent=5 // pred_check
        %p159 = pneg %p158
      $region22: #{outconv_forward.1} parent=5 // pred_check_branch
        %161 = sbr.rel (%p159) target = $region24
      $region23: #{outconv_forward.1} parent=5 // pred_region
        // Predicated region
        $region25: #{outconv_forward.1} parent=23 // pred_check
          %p162 = pneg %p45
        $region26: #{outconv_forward.1} parent=23 // pred_check_branch
          %164 = sbr.rel (%p162) target = $region28
        $region27: #{outconv_forward.1} parent=23 // pred_region
          %p165 = scmp.lt.s32.totalorder %s18, 1
          %s166 = scalar_select %p165, %s18, 1
          %p167 = scmp.lt.s32.totalorder %s19, 1
          %s168 = scalar_select %p167, %s19, 1
          %s169 = smul.addr %s166, 2
          %s170 = sadd.s32 %s168, %s169
          %s171 = smul.addr %s170, 4
          %s172 = scalar_lea.vmem %s0, %s171
        $region28: #{outconv_forward.1} parent=23 // pred_fallthru
          _
      $region24: #{outconv_forward.1} parent=5 // pred_fallthru
        _
      %p173 = scmp.le.s32.totalorder 1, %s11
      %p174 = scmp.lt.s32.totalorder %s11, 5
      %p175 = pnand %p173, %p174
      %p176 = pneg %p175
      // Predicated region
      $region29: #{outconv_forward.1} parent=5 // pred_check
        _
      $region30: #{outconv_forward.1} parent=5 // pred_check_branch
        %178 = sbr.rel (%p175) target = $region32
      $region31: #{outconv_forward.1} parent=5 // pred_region
        %s179 = ssub.s32 %s11, 1
        // Predicated region
        $region33: #{outconv_forward.1} parent=31 // pred_check
          %p180 = pneg %p72
        $region34: #{outconv_forward.1} parent=31 // pred_check_branch
          %182 = sbr.rel (%p180) target = $region36
        $region35: #{outconv_forward.1} parent=31 // pred_region
          %183 = dma.done [#allocation3], 64
        $region36: #{outconv_forward.1} parent=31 // pred_fallthru
          _
        // Predicated region
        $region37: #{outconv_forward.1} parent=31 // pred_check
          %p184 = pneg %p93
        $region38: #{outconv_forward.1} parent=31 // pred_check_branch
          %186 = sbr.rel (%p184) target = $region40
        $region39: #{outconv_forward.1} parent=31 // pred_region
          %187 = dma.done [#allocation5], 64
        $region40: #{outconv_forward.1} parent=31 // pred_fallthru
          _
        %188 = sfence
        %p189 = scmp.lt.s32.totalorder %s20, 1
        %s190 = scalar_select %p189, %s20, 1
        %p191 = scmp.lt.s32.totalorder %s21, 1
        %s192 = scalar_select %p191, %s21, 1
        %s193 = smul.addr %s190, 2
        %s194 = sadd.s32 %s192, %s193
        %s195 = smul.addr %s194, 4
        %s196 = scalar_lea.vmem %s0, %s195
        %p197 = pneg %p51
        %p198 = pneg %p48
        %p199 = pneg %p72
        %p200 = pneg %p69
        %p201 = pneg %p93
        %p202 = pneg %p90
        %p203 = pneg %p121
        %p204 = pneg %p118
        %p205 = scmp.lt.s32.totalorder %s20, 1
        %s206 = scalar_select %p205, %s20, 1
        %p207 = scmp.lt.s32.totalorder %s21, 1
        %s208 = scalar_select %p207, %s21, 1
        %s209 = smul.addr %s206, 2
        %s210 = sadd.s32 %s208, %s209
        %s211 = smul.addr %s210, 4
        %s212 = scalar_lea.vmem %s3, %s211
        %p213 = scmp.lt.s32.totalorder %s20, 1
        %s214 = scalar_select %p213, %s20, 1
        %p215 = scmp.lt.s32.totalorder %s21, 1
        %s216 = scalar_select %p215, %s21, 1
        %s217 = smul.addr %s214, 2
        %s218 = sadd.s32 %s216, %s217
        %s219 = smul.addr %s218, 4
        %s220 = scalar_lea.vmem %s0, %s219
        %p221 = scmp.lt.s32.totalorder %s20, 1
        %s222 = scalar_select %p221, %s20, 1
        %p223 = scmp.lt.s32.totalorder %s21, 1
        %s224 = scalar_select %p223, %s21, 1
        %s225 = smul.addr %s222, 2
        %s226 = sadd.s32 %s224, %s225
        %s227 = smul.addr %s226, 4
        %s228 = scalar_lea.vmem %s3, %s227
        %v229 = vld [vmem:[%s220] sm:$0xf]
        %s230 = sld [smem:[#allocation2]]
        %v231 = vstv %s230
        %v232 = vmul.f32 %v229, %v231
        %s233 = sld [smem:[#allocation4]]
        %v234 = vstv %s233
        %v235 = vadd.f32 %v232, %v234
        %s236 = sld [smem:[#allocation2 + $0x1]]
        %v237 = vstv %s236
        %v238 = vmul.f32 %v229, %v237
        %v240 = vrot.slane %v238, 1
        %v242 = vadd.f32 %v235, %v240
        %s243 = sld [smem:[#allocation2 + $0x2]]
        %v244 = vstv %s243
        %v245 = vmul.f32 %v229, %v244
        %v247 = vrot.slane %v245, 2
        %v249 = vadd.f32 %v242, %v247
        %s250 = sld [smem:[#allocation2 + $0x3]]
        %v251 = vstv %s250
        %v252 = vmul.f32 %v229, %v251
        %v254 = vrot.slane %v252, 3
        %v256 = vadd.f32 %v249, %v254
        %257 = vst [vmem:[%s228] sm:$0x1] %v256
        %s258 = sld [smem:[#allocation2 + $0x80]]
        %v259 = vstv %s258
        %v260 = vmul.f32 %v229, %v259
        %s261 = sld [smem:[#allocation4 + $0x80]]
        %v262 = vstv %s261
        %v263 = vadd.f32 %v260, %v262
        %s264 = sld [smem:[#allocation2 + $0x81]]
        %v265 = vstv %s264
        %v266 = vmul.f32 %v229, %v265
        %v268 = vrot.slane %v266, 1
        %v270 = vadd.f32 %v263, %v268
        %s271 = sld [smem:[#allocation2 + $0x82]]
        %v272 = vstv %s271
        %v273 = vmul.f32 %v229, %v272
        %v275 = vrot.slane %v273, 2
        %v277 = vadd.f32 %v270, %v275
        %s278 = sld [smem:[#allocation2 + $0x83]]
        %v279 = vstv %s278
        %v280 = vmul.f32 %v229, %v279
        %v282 = vrot.slane %v280, 3
        %v284 = vadd.f32 %v277, %v282
        %285 = vst [vmem:[%s228 + $0x1] sm:$0x1] %v284
        %s286 = sld [smem:[#allocation2 + $0x100]]
        %v287 = vstv %s286
        %v288 = vmul.f32 %v229, %v287
        %s289 = sld [smem:[#allocation4 + $0x100]]
        %v290 = vstv %s289
        %v291 = vadd.f32 %v288, %v290
        %s292 = sld [smem:[#allocation2 + $0x101]]
        %v293 = vstv %s292
        %v294 = vmul.f32 %v229, %v293
        %v296 = vrot.slane %v294, 1
        %v298 = vadd.f32 %v291, %v296
        %s299 = sld [smem:[#allocation2 + $0x102]]
        %v300 = vstv %s299
        %v301 = vmul.f32 %v229, %v300
        %v303 = vrot.slane %v301, 2
        %v305 = vadd.f32 %v298, %v303
        %s306 = sld [smem:[#allocation2 + $0x103]]
        %v307 = vstv %s306
        %v308 = vmul.f32 %v229, %v307
        %v310 = vrot.slane %v308, 3
        %v312 = vadd.f32 %v305, %v310
        %313 = vst [vmem:[%s228 + $0x2] sm:$0x1] %v312
        %p314 = scmp.lt.s32.totalorder %s20, 1
        %s315 = scalar_select %p314, %s20, 1
        %p316 = scmp.lt.s32.totalorder %s21, 1
        %s317 = scalar_select %p316, %s21, 1
        %s318 = smul.addr %s315, 2
        %s319 = sadd.s32 %s317, %s318
        %s320 = smul.addr %s319, 4
        %s321 = scalar_lea.vmem %s3, %s320
        // Predicated region
        $region41: #{outconv_forward.1} parent=31 // pred_check
          %p322 = pneg %p118
        $region42: #{outconv_forward.1} parent=31 // pred_check_branch
          %324 = sbr.rel (%p322) target = $region44
        $region43: #{outconv_forward.1} parent=31 // pred_region
          _
        $region44: #{outconv_forward.1} parent=31 // pred_fallthru
          _
      $region32: #{outconv_forward.1} parent=5 // pred_fallthru
        _
      %p325 = scmp.le.s32.totalorder 2, %s11
      // Predicated region
      $region45: #{outconv_forward.1} parent=5 // pred_check
        %p326 = pneg %p325
      $region46: #{outconv_forward.1} parent=5 // pred_check_branch
        %328 = sbr.rel (%p326) target = $region48
      $region47: #{outconv_forward.1} parent=5 // pred_region
        %s329 = ssub.s32 %s11, 2
        // Predicated region
        $region49: #{outconv_forward.1} parent=47 // pred_check
          %p330 = pneg %p124
        $region50: #{outconv_forward.1} parent=47 // pred_check_branch
          %332 = sbr.rel (%p330) target = $region52
        $region51: #{outconv_forward.1} parent=47 // pred_region
          %p333 = scmp.lt.s32.totalorder %s22, 1
          %s334 = scalar_select %p333, %s22, 1
          %p335 = scmp.lt.s32.totalorder %s23, 1
          %s336 = scalar_select %p335, %s23, 1
          %s337 = smul.addr %s334, 2
          %s338 = sadd.s32 %s336, %s337
          %s339 = smul.addr %s338, 4
          %s340 = scalar_lea.vmem %s3, %s339
        $region52: #{outconv_forward.1} parent=47 // pred_fallthru
          _
      $region48: #{outconv_forward.1} parent=5 // pred_fallthru
        _
    $region6: #{outconv_forward.1} parent=1 // loop_footer
      %s15 = sadd.s32 1, %s11
    $region7: #{outconv_forward.1} parent=1 // loop_footer_branch
      %10 = sbr.rel target = $region3
    $region8: #{outconv_forward.1} parent=1 // loop_exit
      _
    %341 = vsyncpa [#allocation3], 1
    %s342 = scalar_lea.sflag [#allocation3], 1
    %343 = vsyncpa %s342, 1
    %344 = vsyncpa [#allocation5], 1

</llo_original>
